<compile_context>
chip_gen: v6e
topology: v6e:2x2x1
jax: 0.10.0
libtpu: 0.0.40
codegen_flags: <defaults>
</compile_context>

<pallas_src>
import functools

import jax
import jax.numpy as jnp
from jax.experimental import pallas as pl
from jax.experimental.pallas import tpu as pltpu

EPS = 1e-5
_LANE = 128


# --------------------------------------------------------------------------- #
# VMEM sizing helpers (generation-aware)
# --------------------------------------------------------------------------- #
def _vmem_capacity_bytes():
    """Physical VMEM of the current chip; safe 64 MiB (v7x) fallback."""
    try:
        info = pltpu.get_tpu_info()
        for name in ("vmem_capacity_bytes", "vmem_size_bytes", "vmem_bytes"):
            v = getattr(info, name, None)
            if v:
                return int(v)
    except Exception:
        pass
    return 64 * 1024 * 1024


def _pick_hw_tile(hw_padded, c, cm, x_itemsize, m_itemsize, out_itemsize, block_budget):
    """Largest TW (multiple of 128 dividing hw_padded, capped at 8192) whose
    double-buffered working set + elementwise temporaries fits block_budget."""
    per_lane = (2 * (c * x_itemsize + cm * m_itemsize)   # 2 buffered input blocks
                + 2 * c * out_itemsize                    # 2 buffered output blocks
                + 8 * c * 4)                              # f32 elementwise temporaries
    k = hw_padded // _LANE
    max_groups = max(1, min(k, block_budget // max(1, per_lane * _LANE), 64))
    for g in range(int(max_groups), 0, -1):
        if k % g == 0:
            return g * _LANE
    return _LANE


# --------------------------------------------------------------------------- #
# Phase 1: lane-partial per-(n, c) sums (accumulator output, VALU-only inner loop)
# --------------------------------------------------------------------------- #
def _stats_kernel(x_ref, m_ref, s_ref):
    # x_ref: (1, C, TW)   m_ref: (1, Cm, TW) with Cm in {1, C}   s_ref: (1, 6, C, 128)
    @pl.when(pl.program_id(2) == 0)
    def _init():
        s_ref[...] = jnp.zeros_like(s_ref)

    x = x_ref[0].astype(jnp.float32)        # (C, TW)
    m = m_ref[0].astype(jnp.float32)        # (Cm, TW)
    c_dim = x.shape[0]
    groups = x.shape[1] // _LANE

    xm = x * m                               # broadcast over C if shared mask
    yp = xm * m                              # X_p * m  = x * m^2
    yq = xm - yp                             # X_q * m  = x * m * (1 - m)

    def lane_partial(a):
        # (R, TW) -> (R, 128): pure per-lane-group VALU adds, no XLU reduction.
        r = a[:, 0:_LANE]
        for g in range(1, groups):
            r = r + a[:, g * _LANE:(g + 1) * _LANE]
        return r

    pm = lane_partial(m)                     # (Cm, 128)
    if pm.shape[0] != c_dim:                 # spatially-shared mask: replicate rows
        pm = jnp.broadcast_to(pm, (c_dim, _LANE))

    s_ref[0, 0] = s_ref[0, 0] + pm
    s_ref[0, 1] = s_ref[0, 1] + lane_partial(yp)
    s_ref[0, 2] = s_ref[0, 2] + lane_partial(yp * yp)
    s_ref[0, 3] = s_ref[0, 3] + lane_partial(yq)
    s_ref[0, 4] = s_ref[0, 4] + lane_partial(yq * yq)
    s_ref[0, 5] = s_ref[0, 5] + lane_partial(x)


# --------------------------------------------------------------------------- #
# Finalize (plain JAX, O(N*C) work): coefficients + SqEx gate
# --------------------------------------------------------------------------- #
def _finalize_coefs(stats, w1, b1, w2, b2, *, n, n_split, hw, mask_shared, eps):
    # stats: (N*n_split, 6, C, 128) f32 lane-partial sums
    c_dim = stats.shape[-2]
    s = stats.reshape(n, n_split, 6, c_dim, _LANE)
    sums = jnp.sum(s, axis=(1, 4))           # (N, 6, C)

    sum_m = sums[:, 0, :]
    sp1, sp2 = sums[:, 1, :], sums[:, 2, :]
    sq1, sq2 = sums[:, 3, :], sums[:, 4, :]
    sx = sums[:, 5, :]

    # torch.sum(m) over the *raw* mask shape (+ eps).
    if mask_shared:
        denom = jnp.sum(sum_m[:, 0]) + eps    # every channel column is identical
    else:
        denom = jnp.sum(sum_m) + eps
    inv_denom = 1.0 / denom
    hwf = jnp.float32(hw)

    mu_p = sp1 * inv_denom
    mu_q = sq1 * inv_denom
    # sum((y - mu)^2) = sum(y^2) - 2*mu*sum(y) + HW*mu^2, clamped against cancellation.
    # TODO(synk): for very large HW with |mean| >> std, a centered (Welford/Chan)
    # per-tile accumulation would be more accurate than this identity.
    ssq_p = jnp.maximum(sp2 - 2.0 * mu_p * sp1 + hwf * mu_p * mu_p, 0.0)
    ssq_q = jnp.maximum(sq2 - 2.0 * mu_q * sq1 + hwf * mu_q * mu_q, 0.0)
    var_p = ssq_p * inv_denom + eps
    var_q = ssq_q * inv_denom + eps
    scale = jnp.sqrt(var_q) * jax.lax.rsqrt(var_p)     # std_q / std_p
    shift = mu_q - scale * mu_p                        # t = scale*(x*m) + shift

    # SqEx gate: global avg-pool + two tiny linears + sigmoid.
    pooled = sx * (1.0 / hwf)                          # (N, C)
    h = jnp.maximum(pooled @ w1 + b1, 0.0)
    gate = jax.nn.sigmoid(h @ w2 + b2)                 # (N, C)

    zero = jnp.zeros_like(gate)
    return jnp.stack([gate, scale, shift, zero], axis=-1)   # (N, C, 4)


# --------------------------------------------------------------------------- #
# Phase 2: fused elementwise blend, out = x + gate*m*x*(t_feat - x)
# --------------------------------------------------------------------------- #
def _apply_kernel(x_ref, m_ref, coef_ref, o_ref):
    # x_ref/o_ref: (1, C, TW)   m_ref: (1, Cm, TW)   coef_ref: (1, C, 4)
    x = x_ref[0].astype(jnp.float32)
    m = m_ref[0].astype(jnp.float32)
    c = coef_ref[0]                           # (C, 4)
    gate = c[:, 0:1]
    scale = c[:, 1:2]
    shift = c[:, 2:3]

    xm = x * m
    u = scale * xm + (shift - x)              # t_feat - x
    o_ref[...] = (x + (gate * m) * (x * u))[None].astype(o_ref.dtype)


# --------------------------------------------------------------------------- #
# Wrapper
# --------------------------------------------------------------------------- #
def pcn_forward(x, m, w1, b1, w2, b2, eps=EPS):
    """x: (N, C, H, W).  m: (N, C, H, W) or spatially-shared (N, 1, H, W)."""
    N, C, H, W = x.shape
    HW = H * W
    assert m.shape in ((N, C, H, W), (N, 1, H, W)), "mask must be (N,C,H,W) or (N,1,H,W)"
    Cm = m.shape[1]
    mask_shared = (Cm == 1)

    x3 = x.reshape(N, C, HW)
    m3 = m.reshape(N, Cm, HW)

    # Zero-pad HW to a lane multiple: padded x and mask are zero, so every sum,
    # the gate's pooled average and the variance identity (true-HW count) are unchanged.
    HWp = ((HW + _LANE - 1) // _LANE) * _LANE
    if HWp != HW:
        pad = ((0, 0), (0, 0), (0, HWp - HW))
        x3 = jnp.pad(x3, pad)
        m3 = jnp.pad(m3, pad)

    # Generation-aware VMEM sizing (v7x: 64 MiB physical; v5e/v6e: 128 MiB).
    phys_vmem = _vmem_capacity_bytes()
    vmem_limit = int(min(phys_vmem * 0.7, 100 * 1024 * 1024))
    block_budget = int(vmem_limit * 0.6)
    TW = _pick_hw_tile(HWp, C, Cm, x3.dtype.itemsize, m3.dtype.itemsize,
                       x.dtype.itemsize, block_budget)
    n_hw = HWp // TW

    # Extra parallel axis so phase 1 keeps both v7x TensorCores busy when N is odd/1.
    n_split = 2 if (N % 2 == 1 and n_hw % 2 == 0) else 1
    tps = n_hw // n_split

    # ---- Phase 1: lane-partial per-(n, c) sums (reduction over HW tiles) ----
    stats = pl.pallas_call(
        _stats_kernel,
        out_shape=jax.ShapeDtypeStruct((N * n_split, 6, C, _LANE), jnp.float32),
        grid=(N, n_split, tps),
        in_specs=[
            pl.BlockSpec((1, C, TW), lambda n, s, j: (n, 0, s * tps + j)),
            pl.BlockSpec((1, Cm, TW), lambda n, s, j: (n, 0, s * tps + j)),
        ],
        out_specs=pl.BlockSpec((1, 6, C, _LANE),
                               lambda n, s, j: (n * n_split + s, 0, 0, 0)),
        compiler_params=pltpu.CompilerParams(
            dimension_semantics=("parallel", "parallel", "arbitrary"),
            vmem_limit_bytes=vmem_limit,
        ),
    )(x3, m3)

    # ---- Finalize: coefficients + SqEx gate (tiny, plain JAX, no extra launch) ----
    coef = _finalize_coefs(stats, w1, b1, w2, b2, n=N, n_split=n_split, hw=HW,
                           mask_shared=mask_shared, eps=eps)

    # ---- Phase 2: fused elementwise blend (fully parallel grid) ----
    out3 = pl.pallas_call(
        _apply_kernel,
        out_shape=jax.ShapeDtypeStruct((N, C, HWp), x.dtype),
        grid=(N, n_hw),
        in_specs=[
            pl.BlockSpec((1, C, TW), lambda n, j: (n, 0, j)),
            pl.BlockSpec((1, Cm, TW), lambda n, j: (n, 0, j)),
            pl.BlockSpec((1, C, 4), lambda n, j: (n, 0, 0)),
        ],
        out_specs=pl.BlockSpec((1, C, TW), lambda n, j: (n, 0, j)),
        compiler_params=pltpu.CompilerParams(
            dimension_semantics=("parallel", "parallel"),
            vmem_limit_bytes=vmem_limit,
        ),
    )(x3, m3, coef)

    if HWp != HW:
        out3 = out3[:, :, :HW]
    return out3.reshape(N, C, H, W)


# --------------------------------------------------------------------------- #
# Pure-JAX reference mirroring the PyTorch forward exactly (mask broadcasts).
# --------------------------------------------------------------------------- #
def pcn_reference(x, m, w1, b1, w2, b2, eps=EPS):
    denom = jnp.sum(m) + eps
    x_p = x * m
    x_q = x * (1.0 - m)

    def wmean(t):
        return (jnp.sum(t * m, axis=(2, 3)) / denom)[:, :, None, None]

    def wstd(t):
        mu = wmean(t)
        return jnp.sqrt(jnp.sum((t * m - mu) ** 2, axis=(2, 3)) / denom + eps)[
            :, :, None, None
        ]

    t_feat = (x_p - wmean(x_p)) / wstd(x_p) * wstd(x_q) + wmean(x_q)

    pooled = jnp.mean(x, axis=(2, 3))                      # (N, C)
    h = jnp.maximum(pooled @ w1 + b1, 0.0)
    gate = jax.nn.sigmoid(h @ w2 + b2)
    beta = x * gate[:, :, None, None]

    context = beta * (t_feat * m) + (1.0 - beta) * (x * m)
    preserved = x * (1.0 - m)
    return context + preserved


if __name__ == "__main__":
    # n_features must be divisible by 16 (SqEx reduction), so C = 32.
    N, C, H, W = 2, 32, 16, 16
    reduction = 16
    Ch = C // reduction

    key = jax.random.PRNGKey(0)
    k = jax.random.split(key, 7)
    x = jax.random.normal(k[0], (N, C, H, W), jnp.float32)
    m_full = (jax.random.uniform(k[1], (N, C, H, W)) > 0.5).astype(jnp.float32)
    m_shared = jax.random.uniform(k[6], (N, 1, H, W), jnp.float32)  # soft, channel-shared

    # PyTorch Linear computes y = x @ W.T + b; we pass pre-transposed weights.
    w1 = 0.1 * jax.random.normal(k[2], (C, Ch), jnp.float32)   # linear1.weight.T
    b1 = 0.1 * jax.random.normal(k[3], (Ch,), jnp.float32)     # linear1.bias
    w2 = 0.1 * jax.random.normal(k[4], (Ch, C), jnp.float32)   # linear2.weight.T
    b2 = 0.1 * jax.random.normal(k[5], (C,), jnp.float32)      # linear2.bias

    fwd = jax.jit(pcn_forward)
    for m in (m_full, m_shared):
        out = jax.block_until_ready(fwd(x, m, w1, b1, w2, b2))
        ref = pcn_reference(x, m, w1, b1, w2, b2)
        assert out.shape == (N, C, H, W)
        assert jnp.allclose(out, ref, rtol=1e-3, atol=1e-3), "mismatch vs reference"

    print("KERNEL_OK")
</pallas_src>

<mosaic_0001>
module attributes {stable_mosaic.version = 11 : i64} {
  func.func @_stats_kernel(%arg0: i32, %arg1: i32, %arg2: i32, %arg3: memref<1x32x256xf32, #tpu.memory_space<vmem>>, %arg4: memref<1x32x256xf32, #tpu.memory_space<vmem>>, %arg5: memref<1x6x32x128xf32, #tpu.memory_space<vmem>>) attributes {dimension_semantics = [#tpu.dimension_semantics<parallel>, #tpu.dimension_semantics<parallel>, #tpu.dimension_semantics<arbitrary>], iteration_bounds = array<i64: 2, 1, 1>, scalar_prefetch = 0 : i64, scratch_operands = 0 : i64, tpu.core_type = #tpu.core_type<tc>, window_params = [{transform_indices = @transform_0, window_bounds = array<i64: 1, 32, 256>}, {transform_indices = @transform_1, window_bounds = array<i64: 1, 32, 256>}, {transform_indices = @transform_2, window_bounds = array<i64: 1, 6, 32, 128>}]} {
    %c0_i32 = arith.constant 0 : i32
    %0 = arith.cmpi eq, %arg2, %c0_i32 : i32
    %1 = arith.extui %0 : i1 to i32
    %c0_i32_0 = arith.constant 0 : i32
    %2 = arith.cmpi ne, %1, %c0_i32_0 : i32
    scf.if %2 {
      %cst = arith.constant 0.000000e+00 : f32
      %66 = vector.broadcast %cst : f32 to vector<1x6x32x128xf32>
      %c0_49 = arith.constant 0 : index
      %c0_50 = arith.constant 0 : index
      %c0_51 = arith.constant 0 : index
      %c0_52 = arith.constant 0 : index
      %67 = vector.load %arg5[%c0_49, %c0_50, %c0_51, %c0_52] : memref<1x6x32x128xf32, #tpu.memory_space<vmem>>, vector<1x6x32x128xf32>
      tpu.vector_store %arg5[%c0_49, %c0_50, %c0_51, %c0_52], %66 {strides = array<i32>} : memref<1x6x32x128xf32, #tpu.memory_space<vmem>>, vector<1x6x32x128xf32>,
    } else {
    }
    %c0 = arith.constant 0 : index
    %c0_1 = arith.constant 0 : index
    %c0_2 = arith.constant 0 : index
    %3 = vector.load %arg3[%c0, %c0_1, %c0_2] : memref<1x32x256xf32, #tpu.memory_space<vmem>>, vector<1x32x256xf32>
    %4 = vector.shape_cast %3 : vector<1x32x256xf32> to vector<32x256xf32>
    %c0_3 = arith.constant 0 : index
    %c0_4 = arith.constant 0 : index
    %c0_5 = arith.constant 0 : index
    %5 = vector.load %arg4[%c0_3, %c0_4, %c0_5] : memref<1x32x256xf32, #tpu.memory_space<vmem>>, vector<1x32x256xf32>
    %6 = vector.shape_cast %5 : vector<1x32x256xf32> to vector<32x256xf32>
    %7 = arith.mulf %4, %6 : vector<32x256xf32>
    %8 = arith.mulf %7, %6 : vector<32x256xf32>
    %9 = arith.subf %7, %8 : vector<32x256xf32>
    %10 = vector.extract_strided_slice %6 {offsets = [0, 0], sizes = [32, 128], strides = [1, 1]} : vector<32x256xf32> to vector<32x128xf32>
    %11 = vector.extract_strided_slice %6 {offsets = [0, 128], sizes = [32, 128], strides = [1, 1]} : vector<32x256xf32> to vector<32x128xf32>
    %12 = arith.addf %10, %11 : vector<32x128xf32>
    %c0_6 = arith.constant 0 : index
    %c0_7 = arith.constant 0 : index
    %c0_8 = arith.constant 0 : index
    %c0_9 = arith.constant 0 : index
    %13 = vector.load %arg5[%c0_6, %c0_7, %c0_8, %c0_9] : memref<1x6x32x128xf32, #tpu.memory_space<vmem>>, vector<1x1x32x128xf32>
    %14 = vector.shape_cast %13 : vector<1x1x32x128xf32> to vector<32x128xf32>
    %15 = arith.addf %14, %12 : vector<32x128xf32>
    %c0_10 = arith.constant 0 : index
    %c0_11 = arith.constant 0 : index
    %c0_12 = arith.constant 0 : index
    %c0_13 = arith.constant 0 : index
    %16 = vector.load %arg5[%c0_10, %c0_11, %c0_12, %c0_13] : memref<1x6x32x128xf32, #tpu.memory_space<vmem>>, vector<1x1x32x128xf32>
    %17 = vector.shape_cast %16 : vector<1x1x32x128xf32> to vector<32x128xf32>
    %18 = vector.shape_cast %15 : vector<32x128xf32> to vector<1x1x32x128xf32>
    tpu.vector_store %arg5[%c0_10, %c0_11, %c0_12, %c0_13], %18 {strides = array<i32>} : memref<1x6x32x128xf32, #tpu.memory_space<vmem>>, vector<1x1x32x128xf32>,
    %c0_14 = arith.constant 0 : index
    %c1 = arith.constant 1 : index
    %c0_15 = arith.constant 0 : index
    %c0_16 = arith.constant 0 : index
    %19 = vector.load %arg5[%c0_14, %c1, %c0_15, %c0_16] : memref<1x6x32x128xf32, #tpu.memory_space<vmem>>, vector<1x1x32x128xf32>
    %20 = vector.shape_cast %19 : vector<1x1x32x128xf32> to vector<32x128xf32>
    %21 = vector.extract_strided_slice %8 {offsets = [0, 0], sizes = [32, 128], strides = [1, 1]} : vector<32x256xf32> to vector<32x128xf32>
    %22 = vector.extract_strided_slice %8 {offsets = [0, 128], sizes = [32, 128], strides = [1, 1]} : vector<32x256xf32> to vector<32x128xf32>
    %23 = arith.addf %21, %22 : vector<32x128xf32>
    %24 = arith.addf %20, %23 : vector<32x128xf32>
    %c0_17 = arith.constant 0 : index
    %c1_18 = arith.constant 1 : index
    %c0_19 = arith.constant 0 : index
    %c0_20 = arith.constant 0 : index
    %25 = vector.load %arg5[%c0_17, %c1_18, %c0_19, %c0_20] : memref<1x6x32x128xf32, #tpu.memory_space<vmem>>, vector<1x1x32x128xf32>
    %26 = vector.shape_cast %25 : vector<1x1x32x128xf32> to vector<32x128xf32>
    %27 = vector.shape_cast %24 : vector<32x128xf32> to vector<1x1x32x128xf32>
    tpu.vector_store %arg5[%c0_17, %c1_18, %c0_19, %c0_20], %27 {strides = array<i32>} : memref<1x6x32x128xf32, #tpu.memory_space<vmem>>, vector<1x1x32x128xf32>,
    %c0_21 = arith.constant 0 : index
    %c2 = arith.constant 2 : index
    %c0_22 = arith.constant 0 : index
    %c0_23 = arith.constant 0 : index
    %28 = vector.load %arg5[%c0_21, %c2, %c0_22, %c0_23] : memref<1x6x32x128xf32, #tpu.memory_space<vmem>>, vector<1x1x32x128xf32>
    %29 = vector.shape_cast %28 : vector<1x1x32x128xf32> to vector<32x128xf32>
    %30 = arith.mulf %8, %8 : vector<32x256xf32>
    %31 = vector.extract_strided_slice %30 {offsets = [0, 0], sizes = [32, 128], strides = [1, 1]} : vector<32x256xf32> to vector<32x128xf32>
    %32 = vector.extract_strided_slice %30 {offsets = [0, 128], sizes = [32, 128], strides = [1, 1]} : vector<32x256xf32> to vector<32x128xf32>
    %33 = arith.addf %31, %32 : vector<32x128xf32>
    %34 = arith.addf %29, %33 : vector<32x128xf32>
    %c0_24 = arith.constant 0 : index
    %c2_25 = arith.constant 2 : index
    %c0_26 = arith.constant 0 : index
    %c0_27 = arith.constant 0 : index
    %35 = vector.load %arg5[%c0_24, %c2_25, %c0_26, %c0_27] : memref<1x6x32x128xf32, #tpu.memory_space<vmem>>, vector<1x1x32x128xf32>
    %36 = vector.shape_cast %35 : vector<1x1x32x128xf32> to vector<32x128xf32>
    %37 = vector.shape_cast %34 : vector<32x128xf32> to vector<1x1x32x128xf32>
    tpu.vector_store %arg5[%c0_24, %c2_25, %c0_26, %c0_27], %37 {strides = array<i32>} : memref<1x6x32x128xf32, #tpu.memory_space<vmem>>, vector<1x1x32x128xf32>,
    %c0_28 = arith.constant 0 : index
    %c3 = arith.constant 3 : index
    %c0_29 = arith.constant 0 : index
    %c0_30 = arith.constant 0 : index
    %38 = vector.load %arg5[%c0_28, %c3, %c0_29, %c0_30] : memref<1x6x32x128xf32, #tpu.memory_space<vmem>>, vector<1x1x32x128xf32>
    %39 = vector.shape_cast %38 : vector<1x1x32x128xf32> to vector<32x128xf32>
    %40 = vector.extract_strided_slice %9 {offsets = [0, 0], sizes = [32, 128], strides = [1, 1]} : vector<32x256xf32> to vector<32x128xf32>
    %41 = vector.extract_strided_slice %9 {offsets = [0, 128], sizes = [32, 128], strides = [1, 1]} : vector<32x256xf32> to vector<32x128xf32>
    %42 = arith.addf %40, %41 : vector<32x128xf32>
    %43 = arith.addf %39, %42 : vector<32x128xf32>
    %c0_31 = arith.constant 0 : index
    %c3_32 = arith.constant 3 : index
    %c0_33 = arith.constant 0 : index
    %c0_34 = arith.constant 0 : index
    %44 = vector.load %arg5[%c0_31, %c3_32, %c0_33, %c0_34] : memref<1x6x32x128xf32, #tpu.memory_space<vmem>>, vector<1x1x32x128xf32>
    %45 = vector.shape_cast %44 : vector<1x1x32x128xf32> to vector<32x128xf32>
    %46 = vector.shape_cast %43 : vector<32x128xf32> to vector<1x1x32x128xf32>
    tpu.vector_store %arg5[%c0_31, %c3_32, %c0_33, %c0_34], %46 {strides = array<i32>} : memref<1x6x32x128xf32, #tpu.memory_space<vmem>>, vector<1x1x32x128xf32>,
    %c0_35 = arith.constant 0 : index
    %c4 = arith.constant 4 : index
    %c0_36 = arith.constant 0 : index
    %c0_37 = arith.constant 0 : index
    %47 = vector.load %arg5[%c0_35, %c4, %c0_36, %c0_37] : memref<1x6x32x128xf32, #tpu.memory_space<vmem>>, vector<1x1x32x128xf32>
    %48 = vector.shape_cast %47 : vector<1x1x32x128xf32> to vector<32x128xf32>
    %49 = arith.mulf %9, %9 : vector<32x256xf32>
    %50 = vector.extract_strided_slice %49 {offsets = [0, 0], sizes = [32, 128], strides = [1, 1]} : vector<32x256xf32> to vector<32x128xf32>
    %51 = vector.extract_strided_slice %49 {offsets = [0, 128], sizes = [32, 128], strides = [1, 1]} : vector<32x256xf32> to vector<32x128xf32>
    %52 = arith.addf %50, %51 : vector<32x128xf32>
    %53 = arith.addf %48, %52 : vector<32x128xf32>
    %c0_38 = arith.constant 0 : index
    %c4_39 = arith.constant 4 : index
    %c0_40 = arith.constant 0 : index
    %c0_41 = arith.constant 0 : index
    %54 = vector.load %arg5[%c0_38, %c4_39, %c0_40, %c0_41] : memref<1x6x32x128xf32, #tpu.memory_space<vmem>>, vector<1x1x32x128xf32>
    %55 = vector.shape_cast %54 : vector<1x1x32x128xf32> to vector<32x128xf32>
    %56 = vector.shape_cast %53 : vector<32x128xf32> to vector<1x1x32x128xf32>
    tpu.vector_store %arg5[%c0_38, %c4_39, %c0_40, %c0_41], %56 {strides = array<i32>} : memref<1x6x32x128xf32, #tpu.memory_space<vmem>>, vector<1x1x32x128xf32>,
    %c0_42 = arith.constant 0 : index
    %c5 = arith.constant 5 : index
    %c0_43 = arith.constant 0 : index
    %c0_44 = arith.constant 0 : index
    %57 = vector.load %arg5[%c0_42, %c5, %c0_43, %c0_44] : memref<1x6x32x128xf32, #tpu.memory_space<vmem>>, vector<1x1x32x128xf32>
    %58 = vector.shape_cast %57 : vector<1x1x32x128xf32> to vector<32x128xf32>
    %59 = vector.extract_strided_slice %4 {offsets = [0, 0], sizes = [32, 128], strides = [1, 1]} : vector<32x256xf32> to vector<32x128xf32>
    %60 = vector.extract_strided_slice %4 {offsets = [0, 128], sizes = [32, 128], strides = [1, 1]} : vector<32x256xf32> to vector<32x128xf32>
    %61 = arith.addf %59, %60 : vector<32x128xf32>
    %62 = arith.addf %58, %61 : vector<32x128xf32>
    %c0_45 = arith.constant 0 : index
    %c5_46 = arith.constant 5 : index
    %c0_47 = arith.constant 0 : index
    %c0_48 = arith.constant 0 : index
    %63 = vector.load %arg5[%c0_45, %c5_46, %c0_47, %c0_48] : memref<1x6x32x128xf32, #tpu.memory_space<vmem>>, vector<1x1x32x128xf32>
    %64 = vector.shape_cast %63 : vector<1x1x32x128xf32> to vector<32x128xf32>
    %65 = vector.shape_cast %62 : vector<32x128xf32> to vector<1x1x32x128xf32>
    tpu.vector_store %arg5[%c0_45, %c5_46, %c0_47, %c0_48], %65 {strides = array<i32>} : memref<1x6x32x128xf32, #tpu.memory_space<vmem>>, vector<1x1x32x128xf32>,
    return
  }
  func.func @transform_0(%arg0: i32, %arg1: i32, %arg2: i32) -> (i32, i32, i32) {
    %c1_i32 = arith.constant 1 : i32
    %0 = arith.muli %arg1, %c1_i32 : i32
    %1 = arith.addi %0, %arg2 : i32
    %c0_i32 = arith.constant 0 : i32
    %c0_i32_0 = arith.constant 0 : i32
    return %arg0, %c0_i32, %1 : i32, i32, i32
  }
  func.func @transform_1(%arg0: i32, %arg1: i32, %arg2: i32) -> (i32, i32, i32) {
    %c1_i32 = arith.constant 1 : i32
    %0 = arith.muli %arg1, %c1_i32 : i32
    %1 = arith.addi %0, %arg2 : i32
    %c0_i32 = arith.constant 0 : i32
    %c0_i32_0 = arith.constant 0 : i32
    return %arg0, %c0_i32, %1 : i32, i32, i32
  }
  func.func @transform_2(%arg0: i32, %arg1: i32, %arg2: i32) -> (i32, i32, i32, i32) {
    %c1_i32 = arith.constant 1 : i32
    %0 = arith.muli %arg0, %c1_i32 : i32
    %1 = arith.addi %0, %arg1 : i32
    %c0_i32 = arith.constant 0 : i32
    %c0_i32_0 = arith.constant 0 : i32
    %c0_i32_1 = arith.constant 0 : i32
    %c0_i32_2 = arith.constant 0 : i32
    return %1, %c0_i32, %c0_i32_0, %c0_i32_1 : i32, i32, i32, i32
  }
}

module attributes {stable_mosaic.version = 11 : i64} {
  func.func @_apply_kernel(%arg0: i32, %arg1: i32, %arg2: memref<1x32x256xf32, #tpu.memory_space<vmem>>, %arg3: memref<1x32x256xf32, #tpu.memory_space<vmem>>, %arg4: memref<1x32x4xf32, #tpu.memory_space<vmem>>, %arg5: memref<1x32x256xf32, #tpu.memory_space<vmem>>) attributes {dimension_semantics = [#tpu.dimension_semantics<parallel>, #tpu.dimension_semantics<parallel>], iteration_bounds = array<i64: 2, 1>, scalar_prefetch = 0 : i64, scratch_operands = 0 : i64, tpu.core_type = #tpu.core_type<tc>, window_params = [{transform_indices = @transform_0, window_bounds = array<i64: 1, 32, 256>}, {transform_indices = @transform_1, window_bounds = array<i64: 1, 32, 256>}, {transform_indices = @transform_2, window_bounds = array<i64: 1, 32, 4>}, {transform_indices = @transform_3, window_bounds = array<i64: 1, 32, 256>}]} {
    %c0 = arith.constant 0 : index
    %c0_0 = arith.constant 0 : index
    %c0_1 = arith.constant 0 : index
    %0 = vector.load %arg2[%c0, %c0_0, %c0_1] : memref<1x32x256xf32, #tpu.memory_space<vmem>>, vector<1x32x256xf32>
    %1 = vector.shape_cast %0 : vector<1x32x256xf32> to vector<32x256xf32>
    %c0_2 = arith.constant 0 : index
    %c0_3 = arith.constant 0 : index
    %c0_4 = arith.constant 0 : index
    %2 = vector.load %arg3[%c0_2, %c0_3, %c0_4] : memref<1x32x256xf32, #tpu.memory_space<vmem>>, vector<1x32x256xf32>
    %3 = vector.shape_cast %2 : vector<1x32x256xf32> to vector<32x256xf32>
    %c0_5 = arith.constant 0 : index
    %c0_6 = arith.constant 0 : index
    %c0_7 = arith.constant 0 : index
    %4 = vector.load %arg4[%c0_5, %c0_6, %c0_7] : memref<1x32x4xf32, #tpu.memory_space<vmem>>, vector<1x32x4xf32>
    %5 = vector.shape_cast %4 : vector<1x32x4xf32> to vector<32x4xf32>
    %6 = vector.extract_strided_slice %5 {offsets = [0, 0], sizes = [32, 1], strides = [1, 1]} : vector<32x4xf32> to vector<32x1xf32>
    %7 = vector.extract_strided_slice %5 {offsets = [0, 1], sizes = [32, 1], strides = [1, 1]} : vector<32x4xf32> to vector<32x1xf32>
    %8 = vector.extract_strided_slice %5 {offsets = [0, 2], sizes = [32, 1], strides = [1, 1]} : vector<32x4xf32> to vector<32x1xf32>
    %9 = arith.mulf %1, %3 : vector<32x256xf32>
    %10 = vector.broadcast %7 : vector<32x1xf32> to vector<32x256xf32>
    %11 = arith.mulf %10, %9 : vector<32x256xf32>
    %12 = vector.broadcast %8 : vector<32x1xf32> to vector<32x256xf32>
    %13 = arith.subf %12, %1 : vector<32x256xf32>
    %14 = arith.addf %11, %13 : vector<32x256xf32>
    %15 = vector.broadcast %6 : vector<32x1xf32> to vector<32x256xf32>
    %16 = arith.mulf %15, %3 : vector<32x256xf32>
    %17 = arith.mulf %1, %14 : vector<32x256xf32>
    %18 = arith.mulf %16, %17 : vector<32x256xf32>
    %19 = arith.addf %1, %18 : vector<32x256xf32>
    %20 = vector.shape_cast %19 : vector<32x256xf32> to vector<1x32x256xf32>
    %c0_8 = arith.constant 0 : index
    %c0_9 = arith.constant 0 : index
    %c0_10 = arith.constant 0 : index
    %21 = vector.load %arg5[%c0_8, %c0_9, %c0_10] : memref<1x32x256xf32, #tpu.memory_space<vmem>>, vector<1x32x256xf32>
    tpu.vector_store %arg5[%c0_8, %c0_9, %c0_10], %20 {strides = array<i32>} : memref<1x32x256xf32, #tpu.memory_space<vmem>>, vector<1x32x256xf32>,
    return
  }
  func.func @transform_0(%arg0: i32, %arg1: i32) -> (i32, i32, i32) {
    %c0_i32 = arith.constant 0 : i32
    %c0_i32_0 = arith.constant 0 : i32
    return %arg0, %c0_i32, %arg1 : i32, i32, i32
  }
  func.func @transform_1(%arg0: i32, %arg1: i32) -> (i32, i32, i32) {
    %c0_i32 = arith.constant 0 : i32
    %c0_i32_0 = arith.constant 0 : i32
    return %arg0, %c0_i32, %arg1 : i32, i32, i32
  }
  func.func @transform_2(%arg0: i32, %arg1: i32) -> (i32, i32, i32) {
    %c0_i32 = arith.constant 0 : i32
    %c0_i32_0 = arith.constant 0 : i32
    %c0_i32_1 = arith.constant 0 : i32
    return %arg0, %c0_i32, %c0_i32_0 : i32, i32, i32
  }
  func.func @transform_3(%arg0: i32, %arg1: i32) -> (i32, i32, i32) {
    %c0_i32 = arith.constant 0 : i32
    %c0_i32_0 = arith.constant 0 : i32
    return %arg0, %c0_i32, %arg1 : i32, i32, i32
  }
}

</mosaic_0001>

<llo_original>
// kernel: pcn_forward.2
$region0: #{pcn_forward.2}
  #allocation0 [shape = 'u32[]', space=smem, size = 0x4, offset = 0x4, fixed_abs, tag = 'smem constant byte address 0x4 - core index']
  #allocation1 [shape = 'u32[144,128]{1,0:T(1,128)}', space=vmem, size = 0x12000, scoped, tag = 'internal scratch']
  %s0 = inlined_call_operand.vmem [shape: f32[2,32,256], index: 0, kind: input, shape index: {}]
  %s1 = inlined_call_operand.vmem [shape: f32[2,32,256], index: 1, kind: input, shape index: {}]
  %s2 = inlined_call_operand.vmem [shape: f32[2,6,32,128], index: 2, kind: output, shape index: {}]
  %s3 = sld [smem:[#allocation0]]
  $region45: #{pcn_forward.2} parent=0
    _
  %s5 = ssub.s32 1, %s3
  %s6 = scalar_select 0, %s5, %s3
  loop: start=0, step=1, limit=4
  $region2: #{pcn_forward.2} parent=0 // loop_pre_header
    _
  $region3: #{pcn_forward.2} parent=0 // loop_header
    %s8 = sphi 0, %s12
    %p9 = scmp.ge.s32.totalorder %s8, 4
    %s15 = sphi 0, %s34
    %s16 = sphi 0, %s30
    %s17 = sphi 0, %s26
    %s18 = sphi 0, %s15
    %s19 = sphi 0, %s16
    %s20 = sphi 0, %s17
    %s21 = sphi 0, %s18
    %s22 = sphi 0, %s19
    %s23 = sphi 0, %s20
    %s41 = sphi 0, %s43
    %s44 = sphi 0, %s41
    %s45 = sphi 0, %s44
    %s61 = sphi 0, %s45
    %s71 = sphi 0, %s73
    %s74 = sphi 0, %s71
    %s75 = sphi 0, %s74
    %s91 = sphi 0, %s75
    %s99 = sphi 0, %s101
    %s102 = sphi 0, %s99
    %s103 = sphi 0, %s102
    %s119 = sphi 0, %s103
  $region4: #{pcn_forward.2} parent=0 // loop_header_branch
    %11 = sbr.rel (%p9) target = $region8
  $region5: #{pcn_forward.2} parent=0 // loop_body
    %s13 = ssub.s32 %s8, 1
    %s14 = ssub.s32 %s8, 2
    %s24 = sadd.s32 1, %s17
    %p25 = scmp.ge.s32.totalorder %s24, 1
    %s26 = scalar_select %p25, 0, %s24
    %s27 = sadd.s32 1, %s16
    %s28 = scalar_select %p25, %s27, %s16
    %p29 = scmp.ge.s32.totalorder %s28, 1
    %s30 = scalar_select %p29, 0, %s28
    %s31 = sadd.s32 1, %s15
    %s32 = scalar_select %p29, %s31, %s15
    %p33 = scmp.ge.s32.totalorder %s32, 2
    %s34 = scalar_select %p33, 0, %s32
    %s35 = sadd.s32 %s16, %s17
    %s36 = sadd.s32 %s30, %s26
    %s37 = ssub.s32 %s15, %s34
    %s38 = ssub.s32 %s35, %s36
    %s39 = sor.u32 %s37, %s38
    %p40 = scmp.eq.s32.totalorder %s39, 0
    %s42 = sadd.s32 %s41, 1
    %s43 = scalar_select %p40, %s41, %s42
    %p46 = pneg %p40
    %p47 = scmp.eq.s32.totalorder %s8, 1
    %p48 = por %p46, %p47
    %p49 = scmp.ne.s32.totalorder %s41, %s44
    %p50 = scmp.eq.s32.totalorder %s8, 0
    %p51 = por %p49, %p50
    %p52 = scmp.ne.s32.totalorder %s41, %s44
    %p53 = scmp.eq.s32.totalorder %s13, 1
    %p54 = por %p52, %p53
    %p55 = scmp.ne.s32.totalorder %s44, %s45
    %p56 = scmp.eq.s32.totalorder %s13, 0
    %p57 = por %p55, %p56
    %p58 = scmp.ne.s32.totalorder %s44, %s45
    %p59 = scmp.eq.s32.totalorder %s14, 1
    %p60 = por %p58, %p59
    %p62 = scmp.ne.s32.totalorder %s45, %s61
    %p63 = scmp.eq.s32.totalorder %s14, 0
    %p64 = por %p62, %p63
    %s65 = sadd.s32 %s16, %s17
    %s66 = sadd.s32 %s30, %s26
    %s67 = ssub.s32 %s15, %s34
    %s68 = ssub.s32 %s65, %s66
    %s69 = sor.u32 %s67, %s68
    %p70 = scmp.eq.s32.totalorder %s69, 0
    %s72 = sadd.s32 %s71, 1
    %s73 = scalar_select %p70, %s71, %s72
    %p76 = pneg %p70
    %p77 = scmp.eq.s32.totalorder %s8, 1
    %p78 = por %p76, %p77
    %p79 = scmp.ne.s32.totalorder %s71, %s74
    %p80 = scmp.eq.s32.totalorder %s8, 0
    %p81 = por %p79, %p80
    %p82 = scmp.ne.s32.totalorder %s71, %s74
    %p83 = scmp.eq.s32.totalorder %s13, 1
    %p84 = por %p82, %p83
    %p85 = scmp.ne.s32.totalorder %s74, %s75
    %p86 = scmp.eq.s32.totalorder %s13, 0
    %p87 = por %p85, %p86
    %p88 = scmp.ne.s32.totalorder %s74, %s75
    %p89 = scmp.eq.s32.totalorder %s14, 1
    %p90 = por %p88, %p89
    %p92 = scmp.ne.s32.totalorder %s75, %s91
    %p93 = scmp.eq.s32.totalorder %s14, 0
    %p94 = por %p92, %p93
    %s95 = sadd.s32 %s15, %s16
    %s96 = sadd.s32 %s34, %s30
    %s97 = ssub.s32 %s95, %s96
    %p98 = scmp.eq.s32.totalorder %s97, 0
    %s100 = sadd.s32 %s99, 1
    %s101 = scalar_select %p98, %s99, %s100
    %p104 = pneg %p98
    %p105 = scmp.eq.s32.totalorder %s8, 1
    %p106 = por %p104, %p105
    %p107 = scmp.ne.s32.totalorder %s99, %s102
    %p108 = scmp.eq.s32.totalorder %s8, 0
    %p109 = por %p107, %p108
    %p110 = scmp.ne.s32.totalorder %s99, %s102
    %p111 = scmp.eq.s32.totalorder %s13, 1
    %p112 = por %p110, %p111
    %p113 = scmp.ne.s32.totalorder %s102, %s103
    %p114 = scmp.eq.s32.totalorder %s13, 0
    %p115 = por %p113, %p114
    %p116 = scmp.ne.s32.totalorder %s102, %s103
    %p117 = scmp.eq.s32.totalorder %s14, 1
    %p118 = por %p116, %p117
    %p120 = scmp.ne.s32.totalorder %s103, %s119
    %p121 = scmp.eq.s32.totalorder %s14, 0
    %p122 = por %p120, %p121
    %p123 = scmp.le.s32.totalorder 1, %s8
    %p124 = scmp.lt.s32.totalorder %s8, 3
    %p125 = pnand %p123, %p124
    %p126 = pneg %p125
    // Predicated region
    $region9: #{pcn_forward.2} parent=5 // pred_check
      _
    $region10: #{pcn_forward.2} parent=5 // pred_check_branch
      %128 = sbr.rel (%p125) target = $region12
    $region11: #{pcn_forward.2} parent=5 // pred_region
      %s129 = ssub.s32 %s8, 1
    $region12: #{pcn_forward.2} parent=5 // pred_fallthru
      _
    %p130 = scmp.lt.s32.totalorder %s8, 2
    // Predicated region
    $region13: #{pcn_forward.2} parent=5 // pred_check
      %p131 = pneg %p130
    $region14: #{pcn_forward.2} parent=5 // pred_check_branch
      %133 = sbr.rel (%p131) target = $region16
    $region15: #{pcn_forward.2} parent=5 // pred_region
      // Predicated region
      $region17: #{pcn_forward.2} parent=15 // pred_check
        %p134 = pneg %p51
      $region18: #{pcn_forward.2} parent=15 // pred_check_branch
        %136 = sbr.rel (%p134) target = $region20
      $region19: #{pcn_forward.2} parent=15 // pred_region
        %s137 = sadd.s32 %s16, %s17
        %s138 = smul.u32 2, %s137
        %p139 = scmp.lt.s32.totalorder %s15, 1
        %s140 = scalar_select %p139, %s15, 1
        %p141 = scmp.lt.s32.totalorder %s138, 1
        %s142 = scalar_select %p141, %s138, 1
        %s143 = smul.addr %s140, 8
        %s144 = sadd.s32 %s142, %s143
        %s145 = smul.addr %s144, 8
        %s146 = scalar_lea.vmem %s0, %s145
        %s147 = sadd.s32 %s16, %s17
        %s148 = smul.u32 2, %s147
      $region20: #{pcn_forward.2} parent=15 // pred_fallthru
        _
      // Predicated region
      $region21: #{pcn_forward.2} parent=15 // pred_check
        %p149 = pneg %p81
      $region22: #{pcn_forward.2} parent=15 // pred_check_branch
        %151 = sbr.rel (%p149) target = $region24
      $region23: #{pcn_forward.2} parent=15 // pred_region
        %s152 = sadd.s32 %s16, %s17
        %s153 = smul.u32 2, %s152
        %p154 = scmp.lt.s32.totalorder %s15, 1
        %s155 = scalar_select %p154, %s15, 1
        %p156 = scmp.lt.s32.totalorder %s153, 1
        %s157 = scalar_select %p156, %s153, 1
        %s158 = smul.addr %s155, 8
        %s159 = sadd.s32 %s157, %s158
        %s160 = smul.addr %s159, 8
        %s161 = scalar_lea.vmem %s1, %s160
        %s162 = sadd.s32 %s16, %s17
        %s163 = smul.u32 2, %s162
      $region24: #{pcn_forward.2} parent=15 // pred_fallthru
        _
    $region16: #{pcn_forward.2} parent=5 // pred_fallthru
      _
    %p164 = scmp.le.s32.totalorder 1, %s8
    %p165 = scmp.lt.s32.totalorder %s8, 3
    %p166 = pnand %p164, %p165
    %p167 = pneg %p166
    // Predicated region
    $region25: #{pcn_forward.2} parent=5 // pred_check
      _
    $region26: #{pcn_forward.2} parent=5 // pred_check_branch
      %169 = sbr.rel (%p166) target = $region28
    $region27: #{pcn_forward.2} parent=5 // pred_region
      %s170 = ssub.s32 %s8, 1
      %s171 = sadd.s32 %s19, %s20
      %s172 = smul.u32 2, %s171
      %p173 = scmp.lt.s32.totalorder %s18, 1
      %s174 = scalar_select %p173, %s18, 1
      %p175 = scmp.lt.s32.totalorder %s172, 1
      %s176 = scalar_select %p175, %s172, 1
      %s177 = smul.addr %s174, 8
      %s178 = sadd.s32 %s176, %s177
      %s179 = smul.addr %s178, 8
      %s180 = scalar_lea.vmem %s0, %s179
      %p181 = pneg %p57
      %p182 = pneg %p54
      %s183 = sadd.s32 %s19, %s20
      %s184 = smul.u32 2, %s183
      %p185 = scmp.lt.s32.totalorder %s18, 1
      %s186 = scalar_select %p185, %s18, 1
      %p187 = scmp.lt.s32.totalorder %s184, 1
      %s188 = scalar_select %p187, %s184, 1
      %s189 = smul.addr %s186, 8
      %s190 = sadd.s32 %s188, %s189
      %s191 = smul.addr %s190, 8
      %s192 = scalar_lea.vmem %s1, %s191
      %p193 = pneg %p87
      %p194 = pneg %p84
      %p195 = pneg %p115
      %p196 = pneg %p112
      %s197 = sadd.s32 %s18, %s19
      %p198 = scmp.lt.s32.totalorder %s197, 1
      %s199 = scalar_select %p198, %s197, 1
      %s200 = smul.addr %s199, 24
      %s201 = smul.addr %s200, 8
      %s202 = scalar_lea.vmem %s2, %s201
      %s203 = sadd.s32 %s19, %s20
      %s204 = smul.u32 2, %s203
      %p205 = scmp.lt.s32.totalorder %s18, 1
      %s206 = scalar_select %p205, %s18, 1
      %p207 = scmp.lt.s32.totalorder %s204, 1
      %s208 = scalar_select %p207, %s204, 1
      %s209 = smul.addr %s206, 8
      %s210 = sadd.s32 %s208, %s209
      %s211 = smul.addr %s210, 8
      %s212 = scalar_lea.vmem %s0, %s211
      %s213 = sadd.s32 %s19, %s20
      %s214 = smul.u32 2, %s213
      %s215 = sadd.s32 %s19, %s20
      %s216 = smul.u32 2, %s215
      %p217 = scmp.lt.s32.totalorder %s18, 1
      %s218 = scalar_select %p217, %s18, 1
      %p219 = scmp.lt.s32.totalorder %s216, 1
      %s220 = scalar_select %p219, %s216, 1
      %s221 = smul.addr %s218, 8
      %s222 = sadd.s32 %s220, %s221
      %s223 = smul.addr %s222, 8
      %s224 = scalar_lea.vmem %s1, %s223
      %s225 = sadd.s32 %s19, %s20
      %s226 = smul.u32 2, %s225
      %s227 = sadd.s32 %s18, %s19
      %p228 = scmp.lt.s32.totalorder %s227, 1
      %s229 = scalar_select %p228, %s227, 1
      %s230 = smul.addr %s229, 24
      %s231 = smul.addr %s230, 8
      %s232 = scalar_lea.vmem %s2, %s231
      %s233 = sadd.s32 %s18, %s19
      %p234 = scmp.eq.s32.totalorder %s20, 0
      // Predicated region
      $region29: #{pcn_forward.2} parent=27 // pred_check
        %p235 = pneg %p234
      $region30: #{pcn_forward.2} parent=27 // pred_check_branch
        %237 = sbr.rel (%p235) target = $region32
      $region31: #{pcn_forward.2} parent=27 // pred_region
        %238 = vst [vmem:[%s232] sm:$0xff] 0.0
        %239 = vst [vmem:[%s232 + $0x8] sm:$0xff] 0.0
        %240 = vst [vmem:[%s232 + $0x10] sm:$0xff] 0.0
        %241 = vst [vmem:[%s232 + $0x18] sm:$0xff] 0.0
        %242 = vst [vmem:[%s232 + $0x20] sm:$0xff] 0.0
        %243 = vst [vmem:[%s232 + $0x28] sm:$0xff] 0.0
        %244 = vst [vmem:[%s232 + $0x30] sm:$0xff] 0.0
        %245 = vst [vmem:[%s232 + $0x38] sm:$0xff] 0.0
        %246 = vst [vmem:[%s232 + $0x40] sm:$0xff] 0.0
        %247 = vst [vmem:[%s232 + $0x48] sm:$0xff] 0.0
        %248 = vst [vmem:[%s232 + $0x50] sm:$0xff] 0.0
        %249 = vst [vmem:[%s232 + $0x58] sm:$0xff] 0.0
        %250 = vst [vmem:[%s232 + $0x60] sm:$0xff] 0.0
        %251 = vst [vmem:[%s232 + $0x68] sm:$0xff] 0.0
        %252 = vst [vmem:[%s232 + $0x70] sm:$0xff] 0.0
        %253 = vst [vmem:[%s232 + $0x78] sm:$0xff] 0.0
        %254 = vst [vmem:[%s232 + $0x80] sm:$0xff] 0.0
        %255 = vst [vmem:[%s232 + $0x88] sm:$0xff] 0.0
        %256 = vst [vmem:[%s232 + $0x90] sm:$0xff] 0.0
        %257 = vst [vmem:[%s232 + $0x98] sm:$0xff] 0.0
        %258 = vst [vmem:[%s232 + $0xa0] sm:$0xff] 0.0
        %259 = vst [vmem:[%s232 + $0xa8] sm:$0xff] 0.0
        %260 = vst [vmem:[%s232 + $0xb0] sm:$0xff] 0.0
        %261 = vst [vmem:[%s232 + $0xb8] sm:$0xff] 0.0
      $region32: #{pcn_forward.2} parent=27 // pred_fallthru
        _
      %v262 = vld [vmem:[%s212] sm:$0xff]
      %v263 = vld [vmem:[%s212 + $0x8] sm:$0xff]
      %v264 = vld [vmem:[%s212 + $0x10] sm:$0xff]
      %v265 = vld [vmem:[%s212 + $0x18] sm:$0xff]
      %v266 = vld [vmem:[%s212 + $0x20] sm:$0xff]
      %v267 = vld [vmem:[%s212 + $0x28] sm:$0xff]
      %v268 = vld [vmem:[%s212 + $0x30] sm:$0xff]
      %v269 = vld [vmem:[%s212 + $0x38] sm:$0xff]
      %v270 = vld [vmem:[%s224] sm:$0xff]
      %v271 = vld [vmem:[%s224 + $0x8] sm:$0xff]
      %v272 = vld [vmem:[%s224 + $0x10] sm:$0xff]
      %v273 = vld [vmem:[%s224 + $0x18] sm:$0xff]
      %v274 = vld [vmem:[%s224 + $0x20] sm:$0xff]
      %v275 = vld [vmem:[%s224 + $0x28] sm:$0xff]
      %v276 = vld [vmem:[%s224 + $0x30] sm:$0xff]
      %v277 = vld [vmem:[%s224 + $0x38] sm:$0xff]
      %v278 = vmul.f32 %v262, %v270
      %v279 = vmul.f32 %v263, %v271
      %v280 = vmul.f32 %v264, %v272
      %v281 = vmul.f32 %v265, %v273
      %v282 = vmul.f32 %v266, %v274
      %v283 = vmul.f32 %v267, %v275
      %v284 = vmul.f32 %v268, %v276
      %v285 = vmul.f32 %v269, %v277
      %v286 = vmul.f32 %v278, %v270
      %v287 = vmul.f32 %v279, %v271
      %v288 = vmul.f32 %v280, %v272
      %v289 = vmul.f32 %v281, %v273
      %v290 = vmul.f32 %v282, %v274
      %v291 = vmul.f32 %v283, %v275
      %v292 = vmul.f32 %v284, %v276
      %v293 = vmul.f32 %v285, %v277
      %v294 = vsub.f32 %v278, %v286
      %v295 = vsub.f32 %v279, %v287
      %v296 = vsub.f32 %v280, %v288
      %v297 = vsub.f32 %v281, %v289
      %v298 = vsub.f32 %v282, %v290
      %v299 = vsub.f32 %v283, %v291
      %v300 = vsub.f32 %v284, %v292
      %v301 = vsub.f32 %v285, %v293
      %v302 = vadd.f32 %v270, %v271
      %v303 = vadd.f32 %v272, %v273
      %v304 = vadd.f32 %v274, %v275
      %v305 = vadd.f32 %v276, %v277
      %v306 = vld [vmem:[%s232] sm:$0xff]
      %v307 = vld [vmem:[%s232 + $0x8] sm:$0xff]
      %v308 = vld [vmem:[%s232 + $0x10] sm:$0xff]
      %v309 = vld [vmem:[%s232 + $0x18] sm:$0xff]
      %v310 = vadd.f32 %v306, %v302
      %v311 = vadd.f32 %v307, %v303
      %v312 = vadd.f32 %v308, %v304
      %v313 = vadd.f32 %v309, %v305
      %314 = vst [vmem:[%s232] sm:$0xff] %v310
      %315 = vst [vmem:[%s232 + $0x8] sm:$0xff] %v311
      %316 = vst [vmem:[%s232 + $0x10] sm:$0xff] %v312
      %317 = vst [vmem:[%s232 + $0x18] sm:$0xff] %v313
      %s318 = scalar_lea.vmem %s232, 32
      %v319 = vld [vmem:[%s318] sm:$0xff]
      %v320 = vld [vmem:[%s318 + $0x8] sm:$0xff]
      %v321 = vld [vmem:[%s318 + $0x10] sm:$0xff]
      %v322 = vld [vmem:[%s318 + $0x18] sm:$0xff]
      %v323 = vadd.f32 %v286, %v287
      %v324 = vadd.f32 %v288, %v289
      %v325 = vadd.f32 %v290, %v291
      %v326 = vadd.f32 %v292, %v293
      %v327 = vadd.f32 %v319, %v323
      %v328 = vadd.f32 %v320, %v324
      %v329 = vadd.f32 %v321, %v325
      %v330 = vadd.f32 %v322, %v326
      %331 = vst [vmem:[%s318] sm:$0xff] %v327
      %332 = vst [vmem:[%s318 + $0x8] sm:$0xff] %v328
      %333 = vst [vmem:[%s318 + $0x10] sm:$0xff] %v329
      %334 = vst [vmem:[%s318 + $0x18] sm:$0xff] %v330
      %s335 = scalar_lea.vmem %s232, 64
      %v336 = vld [vmem:[%s335] sm:$0xff]
      %v337 = vld [vmem:[%s335 + $0x8] sm:$0xff]
      %v338 = vld [vmem:[%s335 + $0x10] sm:$0xff]
      %v339 = vld [vmem:[%s335 + $0x18] sm:$0xff]
      %v340 = vmul.f32 %v286, %v286
      %v341 = vmul.f32 %v287, %v287
      %v342 = vmul.f32 %v288, %v288
      %v343 = vmul.f32 %v289, %v289
      %v344 = vmul.f32 %v290, %v290
      %v345 = vmul.f32 %v291, %v291
      %v346 = vmul.f32 %v292, %v292
      %v347 = vmul.f32 %v293, %v293
      %v348 = vadd.f32 %v340, %v341
      %v349 = vadd.f32 %v342, %v343
      %v350 = vadd.f32 %v344, %v345
      %v351 = vadd.f32 %v346, %v347
      %v352 = vadd.f32 %v336, %v348
      %v353 = vadd.f32 %v337, %v349
      %v354 = vadd.f32 %v338, %v350
      %v355 = vadd.f32 %v339, %v351
      %356 = vst [vmem:[%s335] sm:$0xff] %v352
      %357 = vst [vmem:[%s335 + $0x8] sm:$0xff] %v353
      %358 = vst [vmem:[%s335 + $0x10] sm:$0xff] %v354
      %359 = vst [vmem:[%s335 + $0x18] sm:$0xff] %v355
      %s360 = scalar_lea.vmem %s232, 96
      %v361 = vld [vmem:[%s360] sm:$0xff]
      %v362 = vld [vmem:[%s360 + $0x8] sm:$0xff]
      %v363 = vld [vmem:[%s360 + $0x10] sm:$0xff]
      %v364 = vld [vmem:[%s360 + $0x18] sm:$0xff]
      %v365 = vadd.f32 %v294, %v295
      %v366 = vadd.f32 %v296, %v297
      %v367 = vadd.f32 %v298, %v299
      %v368 = vadd.f32 %v300, %v301
      %v369 = vadd.f32 %v361, %v365
      %v370 = vadd.f32 %v362, %v366
      %v371 = vadd.f32 %v363, %v367
      %v372 = vadd.f32 %v364, %v368
      %373 = vst [vmem:[%s360] sm:$0xff] %v369
      %374 = vst [vmem:[%s360 + $0x8] sm:$0xff] %v370
      %375 = vst [vmem:[%s360 + $0x10] sm:$0xff] %v371
      %376 = vst [vmem:[%s360 + $0x18] sm:$0xff] %v372
      %s377 = scalar_lea.vmem %s232, 128
      %v378 = vld [vmem:[%s377] sm:$0xff]
      %v379 = vld [vmem:[%s377 + $0x8] sm:$0xff]
      %v380 = vld [vmem:[%s377 + $0x10] sm:$0xff]
      %v381 = vld [vmem:[%s377 + $0x18] sm:$0xff]
      %v382 = vmul.f32 %v294, %v294
      %v383 = vmul.f32 %v295, %v295
      %v384 = vmul.f32 %v296, %v296
      %v385 = vmul.f32 %v297, %v297
      %v386 = vmul.f32 %v298, %v298
      %v387 = vmul.f32 %v299, %v299
      %v388 = vmul.f32 %v300, %v300
      %v389 = vmul.f32 %v301, %v301
      %v390 = vadd.f32 %v382, %v383
      %v391 = vadd.f32 %v384, %v385
      %v392 = vadd.f32 %v386, %v387
      %v393 = vadd.f32 %v388, %v389
      %v394 = vadd.f32 %v378, %v390
      %v395 = vadd.f32 %v379, %v391
      %v396 = vadd.f32 %v380, %v392
      %v397 = vadd.f32 %v381, %v393
      %398 = vst [vmem:[%s377] sm:$0xff] %v394
      %399 = vst [vmem:[%s377 + $0x8] sm:$0xff] %v395
      %400 = vst [vmem:[%s377 + $0x10] sm:$0xff] %v396
      %401 = vst [vmem:[%s377 + $0x18] sm:$0xff] %v397
      %s402 = scalar_lea.vmem %s232, 160
      %v403 = vld [vmem:[%s402] sm:$0xff]
      %v404 = vld [vmem:[%s402 + $0x8] sm:$0xff]
      %v405 = vld [vmem:[%s402 + $0x10] sm:$0xff]
      %v406 = vld [vmem:[%s402 + $0x18] sm:$0xff]
      %v407 = vadd.f32 %v262, %v263
      %v408 = vadd.f32 %v264, %v265
      %v409 = vadd.f32 %v266, %v267
      %v410 = vadd.f32 %v268, %v269
      %v411 = vadd.f32 %v403, %v407
      %v412 = vadd.f32 %v404, %v408
      %v413 = vadd.f32 %v405, %v409
      %v414 = vadd.f32 %v406, %v410
      %415 = vst [vmem:[%s402] sm:$0xff] %v411
      %416 = vst [vmem:[%s402 + $0x8] sm:$0xff] %v412
      %417 = vst [vmem:[%s402 + $0x10] sm:$0xff] %v413
      %418 = vst [vmem:[%s402 + $0x18] sm:$0xff] %v414
      %s419 = sadd.s32 %s18, %s19
      %p420 = scmp.lt.s32.totalorder %s419, 1
      %s421 = scalar_select %p420, %s419, 1
      %s422 = smul.addr %s421, 24
      %s423 = smul.addr %s422, 8
      %s424 = scalar_lea.vmem %s2, %s423
      // Predicated region
      $region33: #{pcn_forward.2} parent=27 // pred_check
        %p425 = pneg %p112
      $region34: #{pcn_forward.2} parent=27 // pred_check_branch
        %427 = sbr.rel (%p425) target = $region36
      $region35: #{pcn_forward.2} parent=27 // pred_region
        %s428 = sadd.s32 %s18, %s19
      $region36: #{pcn_forward.2} parent=27 // pred_fallthru
        _
    $region28: #{pcn_forward.2} parent=5 // pred_fallthru
      _
    %p429 = scmp.le.s32.totalorder 2, %s8
    // Predicated region
    $region37: #{pcn_forward.2} parent=5 // pred_check
      %p430 = pneg %p429
    $region38: #{pcn_forward.2} parent=5 // pred_check_branch
      %432 = sbr.rel (%p430) target = $region40
    $region39: #{pcn_forward.2} parent=5 // pred_region
      %s433 = ssub.s32 %s8, 2
      // Predicated region
      $region41: #{pcn_forward.2} parent=39 // pred_check
        %p434 = pneg %p118
      $region42: #{pcn_forward.2} parent=39 // pred_check_branch
        %436 = sbr.rel (%p434) target = $region44
      $region43: #{pcn_forward.2} parent=39 // pred_region
        %s437 = sadd.s32 %s21, %s22
        %p438 = scmp.lt.s32.totalorder %s437, 1
        %s439 = scalar_select %p438, %s437, 1
        %s440 = smul.addr %s439, 24
        %s441 = smul.addr %s440, 8
        %s442 = scalar_lea.vmem %s2, %s441
      $region44: #{pcn_forward.2} parent=39 // pred_fallthru
        _
    $region40: #{pcn_forward.2} parent=5 // pred_fallthru
      _
  $region6: #{pcn_forward.2} parent=0 // loop_footer
    %s12 = sadd.s32 1, %s8
  $region7: #{pcn_forward.2} parent=0 // loop_footer_branch
    %7 = sbr.rel target = $region3
  $region8: #{pcn_forward.2} parent=0 // loop_exit
    _

// kernel: pcn_forward.3
$region0: #{pcn_forward.3}
  #allocation0 [shape = 'u32[]', space=smem, size = 0x4, offset = 0x4, fixed_abs, tag = 'smem constant byte address 0x4 - core index']
  #allocation1 [shape = 'u32[144,128]{1,0:T(1,128)}', space=vmem, size = 0x12000, scoped, tag = 'internal scratch']
  %s0 = inlined_call_operand.vmem [shape: f32[2,32,256], index: 0, kind: input, shape index: {}]
  %s1 = inlined_call_operand.vmem [shape: f32[2,32,256], index: 1, kind: input, shape index: {}]
  %s2 = inlined_call_operand.vmem [shape: f32[2,32,4], index: 2, kind: input, shape index: {}]
  %s3 = inlined_call_operand.vmem [shape: f32[2,32,256], index: 3, kind: output, shape index: {}]
  %s4 = sld [smem:[#allocation0]]
  $region45: #{pcn_forward.3} parent=0
    _
  %s6 = ssub.s32 1, %s4
  %s7 = scalar_select 0, %s6, %s4
  loop: start=0, step=1, limit=4
  $region2: #{pcn_forward.3} parent=0 // loop_pre_header
    _
  $region3: #{pcn_forward.3} parent=0 // loop_header
    %s9 = sphi 0, %s13
    %p10 = scmp.ge.s32.totalorder %s9, 4
    %s16 = sphi 0, %s28
    %s17 = sphi 0, %s24
    %s18 = sphi 0, %s16
    %s19 = sphi 0, %s17
    %s20 = sphi 0, %s18
    %s21 = sphi 0, %s19
    %s33 = sphi 0, %s35
    %s36 = sphi 0, %s33
    %s37 = sphi 0, %s36
    %s53 = sphi 0, %s37
    %s61 = sphi 0, %s63
    %s64 = sphi 0, %s61
    %s65 = sphi 0, %s64
    %s81 = sphi 0, %s65
    %s87 = sphi 0, %s89
    %s90 = sphi 0, %s87
    %s91 = sphi 0, %s90
    %s107 = sphi 0, %s91
    %s115 = sphi 0, %s117
    %s118 = sphi 0, %s115
    %s119 = sphi 0, %s118
    %s135 = sphi 0, %s119
  $region4: #{pcn_forward.3} parent=0 // loop_header_branch
    %12 = sbr.rel (%p10) target = $region8
  $region5: #{pcn_forward.3} parent=0 // loop_body
    %s14 = ssub.s32 %s9, 1
    %s15 = ssub.s32 %s9, 2
    %s22 = sadd.s32 1, %s17
    %p23 = scmp.ge.s32.totalorder %s22, 1
    %s24 = scalar_select %p23, 0, %s22
    %s25 = sadd.s32 1, %s16
    %s26 = scalar_select %p23, %s25, %s16
    %p27 = scmp.ge.s32.totalorder %s26, 2
    %s28 = scalar_select %p27, 0, %s26
    %s29 = ssub.s32 %s16, %s28
    %s30 = ssub.s32 %s17, %s24
    %s31 = sor.u32 %s29, %s30
    %p32 = scmp.eq.s32.totalorder %s31, 0
    %s34 = sadd.s32 %s33, 1
    %s35 = scalar_select %p32, %s33, %s34
    %p38 = pneg %p32
    %p39 = scmp.eq.s32.totalorder %s9, 1
    %p40 = por %p38, %p39
    %p41 = scmp.ne.s32.totalorder %s33, %s36
    %p42 = scmp.eq.s32.totalorder %s9, 0
    %p43 = por %p41, %p42
    %p44 = scmp.ne.s32.totalorder %s33, %s36
    %p45 = scmp.eq.s32.totalorder %s14, 1
    %p46 = por %p44, %p45
    %p47 = scmp.ne.s32.totalorder %s36, %s37
    %p48 = scmp.eq.s32.totalorder %s14, 0
    %p49 = por %p47, %p48
    %p50 = scmp.ne.s32.totalorder %s36, %s37
    %p51 = scmp.eq.s32.totalorder %s15, 1
    %p52 = por %p50, %p51
    %p54 = scmp.ne.s32.totalorder %s37, %s53
    %p55 = scmp.eq.s32.totalorder %s15, 0
    %p56 = por %p54, %p55
    %s57 = ssub.s32 %s16, %s28
    %s58 = ssub.s32 %s17, %s24
    %s59 = sor.u32 %s57, %s58
    %p60 = scmp.eq.s32.totalorder %s59, 0
    %s62 = sadd.s32 %s61, 1
    %s63 = scalar_select %p60, %s61, %s62
    %p66 = pneg %p60
    %p67 = scmp.eq.s32.totalorder %s9, 1
    %p68 = por %p66, %p67
    %p69 = scmp.ne.s32.totalorder %s61, %s64
    %p70 = scmp.eq.s32.totalorder %s9, 0
    %p71 = por %p69, %p70
    %p72 = scmp.ne.s32.totalorder %s61, %s64
    %p73 = scmp.eq.s32.totalorder %s14, 1
    %p74 = por %p72, %p73
    %p75 = scmp.ne.s32.totalorder %s64, %s65
    %p76 = scmp.eq.s32.totalorder %s14, 0
    %p77 = por %p75, %p76
    %p78 = scmp.ne.s32.totalorder %s64, %s65
    %p79 = scmp.eq.s32.totalorder %s15, 1
    %p80 = por %p78, %p79
    %p82 = scmp.ne.s32.totalorder %s65, %s81
    %p83 = scmp.eq.s32.totalorder %s15, 0
    %p84 = por %p82, %p83
    %s85 = ssub.s32 %s16, %s28
    %p86 = scmp.eq.s32.totalorder %s85, 0
    %s88 = sadd.s32 %s87, 1
    %s89 = scalar_select %p86, %s87, %s88
    %p92 = pneg %p86
    %p93 = scmp.eq.s32.totalorder %s9, 1
    %p94 = por %p92, %p93
    %p95 = scmp.ne.s32.totalorder %s87, %s90
    %p96 = scmp.eq.s32.totalorder %s9, 0
    %p97 = por %p95, %p96
    %p98 = scmp.ne.s32.totalorder %s87, %s90
    %p99 = scmp.eq.s32.totalorder %s14, 1
    %p100 = por %p98, %p99
    %p101 = scmp.ne.s32.totalorder %s90, %s91
    %p102 = scmp.eq.s32.totalorder %s14, 0
    %p103 = por %p101, %p102
    %p104 = scmp.ne.s32.totalorder %s90, %s91
    %p105 = scmp.eq.s32.totalorder %s15, 1
    %p106 = por %p104, %p105
    %p108 = scmp.ne.s32.totalorder %s91, %s107
    %p109 = scmp.eq.s32.totalorder %s15, 0
    %p110 = por %p108, %p109
    %s111 = ssub.s32 %s16, %s28
    %s112 = ssub.s32 %s17, %s24
    %s113 = sor.u32 %s111, %s112
    %p114 = scmp.eq.s32.totalorder %s113, 0
    %s116 = sadd.s32 %s115, 1
    %s117 = scalar_select %p114, %s115, %s116
    %p120 = pneg %p114
    %p121 = scmp.eq.s32.totalorder %s9, 1
    %p122 = por %p120, %p121
    %p123 = scmp.ne.s32.totalorder %s115, %s118
    %p124 = scmp.eq.s32.totalorder %s9, 0
    %p125 = por %p123, %p124
    %p126 = scmp.ne.s32.totalorder %s115, %s118
    %p127 = scmp.eq.s32.totalorder %s14, 1
    %p128 = por %p126, %p127
    %p129 = scmp.ne.s32.totalorder %s118, %s119
    %p130 = scmp.eq.s32.totalorder %s14, 0
    %p131 = por %p129, %p130
    %p132 = scmp.ne.s32.totalorder %s118, %s119
    %p133 = scmp.eq.s32.totalorder %s15, 1
    %p134 = por %p132, %p133
    %p136 = scmp.ne.s32.totalorder %s119, %s135
    %p137 = scmp.eq.s32.totalorder %s15, 0
    %p138 = por %p136, %p137
    %p139 = scmp.le.s32.totalorder 1, %s9
    %p140 = scmp.lt.s32.totalorder %s9, 3
    %p141 = pnand %p139, %p140
    %p142 = pneg %p141
    // Predicated region
    $region9: #{pcn_forward.3} parent=5 // pred_check
      _
    $region10: #{pcn_forward.3} parent=5 // pred_check_branch
      %144 = sbr.rel (%p141) target = $region12
    $region11: #{pcn_forward.3} parent=5 // pred_region
      %s145 = ssub.s32 %s9, 1
    $region12: #{pcn_forward.3} parent=5 // pred_fallthru
      _
    %p146 = scmp.lt.s32.totalorder %s9, 2
    // Predicated region
    $region13: #{pcn_forward.3} parent=5 // pred_check
      %p147 = pneg %p146
    $region14: #{pcn_forward.3} parent=5 // pred_check_branch
      %149 = sbr.rel (%p147) target = $region16
    $region15: #{pcn_forward.3} parent=5 // pred_region
      // Predicated region
      $region17: #{pcn_forward.3} parent=15 // pred_check
        %p150 = pneg %p43
      $region18: #{pcn_forward.3} parent=15 // pred_check_branch
        %152 = sbr.rel (%p150) target = $region20
      $region19: #{pcn_forward.3} parent=15 // pred_region
        %s153 = smul.u32 2, %s17
        %p154 = scmp.lt.s32.totalorder %s16, 1
        %s155 = scalar_select %p154, %s16, 1
        %p156 = scmp.lt.s32.totalorder %s153, 1
        %s157 = scalar_select %p156, %s153, 1
        %s158 = smul.addr %s155, 8
        %s159 = sadd.s32 %s157, %s158
        %s160 = smul.addr %s159, 8
        %s161 = scalar_lea.vmem %s0, %s160
        %s162 = smul.u32 2, %s17
      $region20: #{pcn_forward.3} parent=15 // pred_fallthru
        _
      // Predicated region
      $region21: #{pcn_forward.3} parent=15 // pred_check
        %p163 = pneg %p71
      $region22: #{pcn_forward.3} parent=15 // pred_check_branch
        %165 = sbr.rel (%p163) target = $region24
      $region23: #{pcn_forward.3} parent=15 // pred_region
        %s166 = smul.u32 2, %s17
        %p167 = scmp.lt.s32.totalorder %s16, 1
        %s168 = scalar_select %p167, %s16, 1
        %p169 = scmp.lt.s32.totalorder %s166, 1
        %s170 = scalar_select %p169, %s166, 1
        %s171 = smul.addr %s168, 8
        %s172 = sadd.s32 %s170, %s171
        %s173 = smul.addr %s172, 8
        %s174 = scalar_lea.vmem %s1, %s173
        %s175 = smul.u32 2, %s17
      $region24: #{pcn_forward.3} parent=15 // pred_fallthru
        _
      // Predicated region
      $region25: #{pcn_forward.3} parent=15 // pred_check
        %p176 = pneg %p97
      $region26: #{pcn_forward.3} parent=15 // pred_check_branch
        %178 = sbr.rel (%p176) target = $region28
      $region27: #{pcn_forward.3} parent=15 // pred_region
        %p179 = scmp.lt.s32.totalorder %s16, 1
        %s180 = scalar_select %p179, %s16, 1
        %s181 = smul.addr %s180, 4
        %s182 = smul.addr %s181, 8
        %s183 = scalar_lea.vmem %s2, %s182
      $region28: #{pcn_forward.3} parent=15 // pred_fallthru
        _
    $region16: #{pcn_forward.3} parent=5 // pred_fallthru
      _
    %p184 = scmp.le.s32.totalorder 1, %s9
    %p185 = scmp.lt.s32.totalorder %s9, 3
    %p186 = pnand %p184, %p185
    %p187 = pneg %p186
    // Predicated region
    $region29: #{pcn_forward.3} parent=5 // pred_check
      _
    $region30: #{pcn_forward.3} parent=5 // pred_check_branch
      %189 = sbr.rel (%p186) target = $region32
    $region31: #{pcn_forward.3} parent=5 // pred_region
      %s190 = ssub.s32 %s9, 1
      %s191 = smul.u32 2, %s19
      %p192 = scmp.lt.s32.totalorder %s18, 1
      %s193 = scalar_select %p192, %s18, 1
      %p194 = scmp.lt.s32.totalorder %s191, 1
      %s195 = scalar_select %p194, %s191, 1
      %s196 = smul.addr %s193, 8
      %s197 = sadd.s32 %s195, %s196
      %s198 = smul.addr %s197, 8
      %s199 = scalar_lea.vmem %s0, %s198
      %p200 = pneg %p49
      %p201 = pneg %p46
      %s202 = smul.u32 2, %s19
      %p203 = scmp.lt.s32.totalorder %s18, 1
      %s204 = scalar_select %p203, %s18, 1
      %p205 = scmp.lt.s32.totalorder %s202, 1
      %s206 = scalar_select %p205, %s202, 1
      %s207 = smul.addr %s204, 8
      %s208 = sadd.s32 %s206, %s207
      %s209 = smul.addr %s208, 8
      %s210 = scalar_lea.vmem %s1, %s209
      %p211 = pneg %p77
      %p212 = pneg %p74
      %p213 = scmp.lt.s32.totalorder %s18, 1
      %s214 = scalar_select %p213, %s18, 1
      %s215 = smul.addr %s214, 4
      %s216 = smul.addr %s215, 8
      %s217 = scalar_lea.vmem %s2, %s216
      %p218 = pneg %p103
      %p219 = pneg %p100
      %p220 = pneg %p131
      %p221 = pneg %p128
      %s222 = smul.u32 2, %s19
      %p223 = scmp.lt.s32.totalorder %s18, 1
      %s224 = scalar_select %p223, %s18, 1
      %p225 = scmp.lt.s32.totalorder %s222, 1
      %s226 = scalar_select %p225, %s222, 1
      %s227 = smul.addr %s224, 8
      %s228 = sadd.s32 %s226, %s227
      %s229 = smul.addr %s228, 8
      %s230 = scalar_lea.vmem %s3, %s229
      %s231 = smul.u32 2, %s19
      %p232 = scmp.lt.s32.totalorder %s18, 1
      %s233 = scalar_select %p232, %s18, 1
      %p234 = scmp.lt.s32.totalorder %s231, 1
      %s235 = scalar_select %p234, %s231, 1
      %s236 = smul.addr %s233, 8
      %s237 = sadd.s32 %s235, %s236
      %s238 = smul.addr %s237, 8
      %s239 = scalar_lea.vmem %s0, %s238
      %s240 = smul.u32 2, %s19
      %s241 = smul.u32 2, %s19
      %p242 = scmp.lt.s32.totalorder %s18, 1
      %s243 = scalar_select %p242, %s18, 1
      %p244 = scmp.lt.s32.totalorder %s241, 1
      %s245 = scalar_select %p244, %s241, 1
      %s246 = smul.addr %s243, 8
      %s247 = sadd.s32 %s245, %s246
      %s248 = smul.addr %s247, 8
      %s249 = scalar_lea.vmem %s1, %s248
      %s250 = smul.u32 2, %s19
      %p251 = scmp.lt.s32.totalorder %s18, 1
      %s252 = scalar_select %p251, %s18, 1
      %s253 = smul.addr %s252, 4
      %s254 = smul.addr %s253, 8
      %s255 = scalar_lea.vmem %s2, %s254
      %s256 = smul.u32 2, %s19
      %p257 = scmp.lt.s32.totalorder %s18, 1
      %s258 = scalar_select %p257, %s18, 1
      %p259 = scmp.lt.s32.totalorder %s256, 1
      %s260 = scalar_select %p259, %s256, 1
      %s261 = smul.addr %s258, 8
      %s262 = sadd.s32 %s260, %s261
      %s263 = smul.addr %s262, 8
      %s264 = scalar_lea.vmem %s3, %s263
      %s265 = smul.u32 2, %s19
      %v266 = vld [vmem:[%s239] sm:$0xff]
      %v267 = vld [vmem:[%s239 + $0x8] sm:$0xff]
      %v268 = vld [vmem:[%s239 + $0x10] sm:$0xff]
      %v269 = vld [vmem:[%s239 + $0x18] sm:$0xff]
      %v270 = vld [vmem:[%s239 + $0x20] sm:$0xff]
      %v271 = vld [vmem:[%s239 + $0x28] sm:$0xff]
      %v272 = vld [vmem:[%s239 + $0x30] sm:$0xff]
      %v273 = vld [vmem:[%s239 + $0x38] sm:$0xff]
      %v274 = vld [vmem:[%s249] sm:$0xff]
      %v275 = vld [vmem:[%s249 + $0x8] sm:$0xff]
      %v276 = vld [vmem:[%s249 + $0x10] sm:$0xff]
      %v277 = vld [vmem:[%s249 + $0x18] sm:$0xff]
      %v278 = vld [vmem:[%s249 + $0x20] sm:$0xff]
      %v279 = vld [vmem:[%s249 + $0x28] sm:$0xff]
      %v280 = vld [vmem:[%s249 + $0x30] sm:$0xff]
      %v281 = vld [vmem:[%s249 + $0x38] sm:$0xff]
      %v282 = vld [vmem:[%s255] sm:$0xff]
      %v283 = vld [vmem:[%s255 + $0x8] sm:$0xff]
      %v284 = vld [vmem:[%s255 + $0x10] sm:$0xff]
      %v285 = vld [vmem:[%s255 + $0x18] sm:$0xff]
      %v286 = vmul.f32 %v266, %v274
      %v287 = vmul.f32 %v267, %v275
      %v288 = vmul.f32 %v268, %v276
      %v289 = vmul.f32 %v269, %v277
      %v290 = vmul.f32 %v270, %v278
      %v291 = vmul.f32 %v271, %v279
      %v292 = vmul.f32 %v272, %v280
      %v293 = vmul.f32 %v273, %v281
      %295 = vset.pattern.permute.xlu0 1
      %296 = vperm.xlu0 %295, %v282
      %v297 = vpop.permute.xlu0 %296
      %300 = vset.pattern.permute.xlu0 1
      %301 = vperm.xlu0 %300, %v283
      %v302 = vpop.permute.xlu0 %301
      %305 = vset.pattern.permute.xlu0 1
      %306 = vperm.xlu0 %305, %v284
      %v307 = vpop.permute.xlu0 %306
      %310 = vset.pattern.permute.xlu0 1
      %311 = vperm.xlu0 %310, %v285
      %v312 = vpop.permute.xlu0 %311
      %v314 = vmul.f32 %v297, %v286
      %v315 = vmul.f32 %v297, %v287
      %v316 = vmul.f32 %v302, %v288
      %v317 = vmul.f32 %v302, %v289
      %v318 = vmul.f32 %v307, %v290
      %v319 = vmul.f32 %v307, %v291
      %v320 = vmul.f32 %v312, %v292
      %v321 = vmul.f32 %v312, %v293
      %322 = vset.pattern.permute.xlu0 2
      %323 = vperm.xlu0 %322, %v282
      %v324 = vpop.permute.xlu0 %323
      %326 = vset.pattern.permute.xlu0 2
      %327 = vperm.xlu0 %326, %v283
      %v328 = vpop.permute.xlu0 %327
      %330 = vset.pattern.permute.xlu0 2
      %331 = vperm.xlu0 %330, %v284
      %v332 = vpop.permute.xlu0 %331
      %334 = vset.pattern.permute.xlu0 2
      %335 = vperm.xlu0 %334, %v285
      %v336 = vpop.permute.xlu0 %335
      %v338 = vsub.f32 %v324, %v266
      %v339 = vsub.f32 %v324, %v267
      %v340 = vsub.f32 %v328, %v268
      %v341 = vsub.f32 %v328, %v269
      %v342 = vsub.f32 %v332, %v270
      %v343 = vsub.f32 %v332, %v271
      %v344 = vsub.f32 %v336, %v272
      %v345 = vsub.f32 %v336, %v273
      %v346 = vadd.f32 %v314, %v338
      %v347 = vadd.f32 %v315, %v339
      %v348 = vadd.f32 %v316, %v340
      %v349 = vadd.f32 %v317, %v341
      %v350 = vadd.f32 %v318, %v342
      %v351 = vadd.f32 %v319, %v343
      %v352 = vadd.f32 %v320, %v344
      %v353 = vadd.f32 %v321, %v345
      %354 = vset.pattern.permute.xlu0 0
      %355 = vperm.xlu0 %354, %v282
      %v356 = vpop.permute.xlu0 %355
      %358 = vset.pattern.permute.xlu0 0
      %359 = vperm.xlu0 %358, %v283
      %v360 = vpop.permute.xlu0 %359
      %362 = vset.pattern.permute.xlu0 0
      %363 = vperm.xlu0 %362, %v284
      %v364 = vpop.permute.xlu0 %363
      %366 = vset.pattern.permute.xlu0 0
      %367 = vperm.xlu0 %366, %v285
      %v368 = vpop.permute.xlu0 %367
      %v370 = vmul.f32 %v356, %v274
      %v371 = vmul.f32 %v356, %v275
      %v372 = vmul.f32 %v360, %v276
      %v373 = vmul.f32 %v360, %v277
      %v374 = vmul.f32 %v364, %v278
      %v375 = vmul.f32 %v364, %v279
      %v376 = vmul.f32 %v368, %v280
      %v377 = vmul.f32 %v368, %v281
      %v378 = vmul.f32 %v266, %v346
      %v379 = vmul.f32 %v267, %v347
      %v380 = vmul.f32 %v268, %v348
      %v381 = vmul.f32 %v269, %v349
      %v382 = vmul.f32 %v270, %v350
      %v383 = vmul.f32 %v271, %v351
      %v384 = vmul.f32 %v272, %v352
      %v385 = vmul.f32 %v273, %v353
      %v386 = vmul.f32 %v370, %v378
      %v387 = vmul.f32 %v371, %v379
      %v388 = vmul.f32 %v372, %v380
      %v389 = vmul.f32 %v373, %v381
      %v390 = vmul.f32 %v374, %v382
      %v391 = vmul.f32 %v375, %v383
      %v392 = vmul.f32 %v376, %v384
      %v393 = vmul.f32 %v377, %v385
      %v394 = vadd.f32 %v266, %v386
      %v395 = vadd.f32 %v267, %v387
      %v396 = vadd.f32 %v268, %v388
      %v397 = vadd.f32 %v269, %v389
      %v398 = vadd.f32 %v270, %v390
      %v399 = vadd.f32 %v271, %v391
      %v400 = vadd.f32 %v272, %v392
      %v401 = vadd.f32 %v273, %v393
      %402 = vst [vmem:[%s264] sm:$0xff] %v394
      %403 = vst [vmem:[%s264 + $0x8] sm:$0xff] %v395
      %404 = vst [vmem:[%s264 + $0x10] sm:$0xff] %v396
      %405 = vst [vmem:[%s264 + $0x18] sm:$0xff] %v397
      %406 = vst [vmem:[%s264 + $0x20] sm:$0xff] %v398
      %407 = vst [vmem:[%s264 + $0x28] sm:$0xff] %v399
      %408 = vst [vmem:[%s264 + $0x30] sm:$0xff] %v400
      %409 = vst [vmem:[%s264 + $0x38] sm:$0xff] %v401
      %s410 = smul.u32 2, %s19
      %p411 = scmp.lt.s32.totalorder %s18, 1
      %s412 = scalar_select %p411, %s18, 1
      %p413 = scmp.lt.s32.totalorder %s410, 1
      %s414 = scalar_select %p413, %s410, 1
      %s415 = smul.addr %s412, 8
      %s416 = sadd.s32 %s414, %s415
      %s417 = smul.addr %s416, 8
      %s418 = scalar_lea.vmem %s3, %s417
      // Predicated region
      $region33: #{pcn_forward.3} parent=31 // pred_check
        %p419 = pneg %p128
      $region34: #{pcn_forward.3} parent=31 // pred_check_branch
        %421 = sbr.rel (%p419) target = $region36
      $region35: #{pcn_forward.3} parent=31 // pred_region
        %s422 = smul.u32 2, %s19
      $region36: #{pcn_forward.3} parent=31 // pred_fallthru
        _
    $region32: #{pcn_forward.3} parent=5 // pred_fallthru
      _
    %p423 = scmp.le.s32.totalorder 2, %s9
    // Predicated region
    $region37: #{pcn_forward.3} parent=5 // pred_check
      %p424 = pneg %p423
    $region38: #{pcn_forward.3} parent=5 // pred_check_branch
      %426 = sbr.rel (%p424) target = $region40
    $region39: #{pcn_forward.3} parent=5 // pred_region
      %s427 = ssub.s32 %s9, 2
      // Predicated region
      $region41: #{pcn_forward.3} parent=39 // pred_check
        %p428 = pneg %p134
      $region42: #{pcn_forward.3} parent=39 // pred_check_branch
        %430 = sbr.rel (%p428) target = $region44
      $region43: #{pcn_forward.3} parent=39 // pred_region
        %s431 = smul.u32 2, %s21
        %p432 = scmp.lt.s32.totalorder %s20, 1
        %s433 = scalar_select %p432, %s20, 1
        %p434 = scmp.lt.s32.totalorder %s431, 1
        %s435 = scalar_select %p434, %s431, 1
        %s436 = smul.addr %s433, 8
        %s437 = sadd.s32 %s435, %s436
        %s438 = smul.addr %s437, 8
        %s439 = scalar_lea.vmem %s3, %s438
      $region44: #{pcn_forward.3} parent=39 // pred_fallthru
        _
    $region40: #{pcn_forward.3} parent=5 // pred_fallthru
      _
  $region6: #{pcn_forward.3} parent=0 // loop_footer
    %s13 = sadd.s32 1, %s9
  $region7: #{pcn_forward.3} parent=0 // loop_footer_branch
    %8 = sbr.rel target = $region3
  $region8: #{pcn_forward.3} parent=0 // loop_exit
    _

</llo_original>
